<compile_context>
chip_gen: v7x
topology: tpu7x:2x2x1
jax: 0.10.0
libtpu: 0.0.40
codegen_flags: <defaults>
</compile_context>

<pallas_src>
import jax
import jax.numpy as jnp
from jax.experimental import pallas as pl
from jax.experimental.pallas import tpu as pltpu

LANE = 128
SUBLANE = 8


def _round_up(x, m):
    return ((x + m - 1) // m) * m


def _cdiv(a, b):
    return -(-a // b)


# --------------------------------------------------------------------------- #
# Kernel
# --------------------------------------------------------------------------- #
def ppo_fused_kernel(x_ref,
                     w1_ref, b1_ref,
                     w2_ref, b2_ref,
                     w3_ref, b3_ref,
                     wh_ref, bh_ref,
                     out_ref):
    """One batch tile of the PPO forward: 3 shared Linear+ReLU layers plus the
    fused (actor ++ critic) head, emitted as a single lane-dense bf16 tile."""
    # bf16 MXU operands, f32 accumulation; bias/ReLU in f32 (v5e-safe).
    # .astype is a no-op if the caller already supplies bf16 state.
    h = x_ref[...].astype(jnp.bfloat16)

    h = jnp.dot(h, w1_ref[...], preferred_element_type=jnp.float32) + b1_ref[...]
    h = jnp.maximum(h, 0.0).astype(jnp.bfloat16)

    h = jnp.dot(h, w2_ref[...], preferred_element_type=jnp.float32) + b2_ref[...]
    h = jnp.maximum(h, 0.0).astype(jnp.bfloat16)

    h = jnp.dot(h, w3_ref[...], preferred_element_type=jnp.float32) + b3_ref[...]
    h = jnp.maximum(h, 0.0).astype(jnp.bfloat16)

    out_ref[...] = (jnp.dot(h, wh_ref[...], preferred_element_type=jnp.float32)
                    + bh_ref[...]).astype(out_ref.dtype)


# --------------------------------------------------------------------------- #
# Wrapper
# --------------------------------------------------------------------------- #
_TILE_CAP = 2048  # ~6 MiB working set/tile -> comfortably inside 32 MiB scoped VMEM


def _choose_tile_b(B):
    """Largest batch tile (multiple of 16 rows, cap 2048) that still leaves the
    grid with >=2 steps for mid/large batches (v7x: keep both TCs busy)."""
    if B < 16:
        return max(B, 1)                      # single full-array block
    tile_b = min(_TILE_CAP, _round_up(B, 16))
    if B > 64:
        while _cdiv(B, tile_b) < 2 and tile_b > 16:
            tile_b = _round_up(_cdiv(tile_b, 2), 16)
    return tile_b


def ppo_forward(state, packed, action_dim, *, tile_b=None, return_fused=False):
    """Run the fused PPO forward.

    state:  [B, state_dim] (f32 or bf16 — bf16 avoids the in-kernel cast and
            halves the input HBM stream if the producer can emit it).
    Returns (logits [B, action_dim], value [B, 1]) in bf16, or — with
    `return_fused=True` — the raw lane-dense [B, head_p] bf16 block so the
    consumer can fuse the slicing and avoid extra HBM passes.
    """
    B, state_dim = state.shape
    head_p = packed["wh"].shape[1]

    if tile_b is None:
        tile_b = _choose_tile_b(B)
    num_tiles = _cdiv(B, tile_b)

    def resident(arr):
        # Full-array block, same block index every grid step -> stays in VMEM.
        return pl.BlockSpec(arr.shape, lambda i: (0, 0))

    out = pl.pallas_call(
        ppo_fused_kernel,
        out_shape=jax.ShapeDtypeStruct((B, head_p), jnp.bfloat16),
        grid=(num_tiles,),
        in_specs=[
            pl.BlockSpec((tile_b, state_dim), lambda i: (i, 0)),
            resident(packed["w1"]), resident(packed["b1"]),
            resident(packed["w2"]), resident(packed["b2"]),
            resident(packed["w3"]), resident(packed["b3"]),
            resident(packed["wh"]), resident(packed["bh"]),
        ],
        out_specs=pl.BlockSpec((tile_b, head_p), lambda i: (i, 0)),
        compiler_params=pltpu.CompilerParams(
            dimension_semantics=("parallel",),
            vmem_limit_bytes=32 * 1024 * 1024,  # safe on v5e/v6e/v7x at this cap
        ),
    )(state,
      packed["w1"], packed["b1"],
      packed["w2"], packed["b2"],
      packed["w3"], packed["b3"],
      packed["wh"], packed["bh"])

    if return_fused:
        return out
    # TODO(synk): if the critic baseline needs f32 precision, emit a second
    # narrow f32 value output instead of slicing the bf16 fused block.
    logits = out[:, :action_dim]
    value = out[:, action_dim:action_dim + 1]
    return logits, value


# --------------------------------------------------------------------------- #
# Parameter construction / packing
# --------------------------------------------------------------------------- #
def _orthogonal(key, out_dim, in_dim, gain=1.0):
    """Deterministic orthogonal init (mimics torch.nn.init.orthogonal_, gain=1)."""
    a = jax.random.normal(key, (max(out_dim, in_dim), min(out_dim, in_dim)),
                          dtype=jnp.float32)
    q, r = jnp.linalg.qr(a)
    q = q * jnp.sign(jnp.diagonal(r))[None, :]
    if out_dim < in_dim:
        q = q.T
    return gain * q[:out_dim, :in_dim]


def init_params(key, state_dim, action_dim, hidden_dim=128):
    """Logical (unpadded, f32) parameters in [in_features, out_features] layout."""
    ks = jax.random.split(key, 5)
    half = hidden_dim // 2
    w1 = _orthogonal(ks[0], hidden_dim, state_dim)
    w2 = _orthogonal(ks[1], hidden_dim, hidden_dim)
    w3 = _orthogonal(ks[2], half, hidden_dim)
    wa = _orthogonal(ks[3], action_dim, half)
    wc = _orthogonal(ks[4], 1, half)
    return {
        "w1": w1.T, "b1": jnp.zeros((1, hidden_dim), jnp.float32),
        "w2": w2.T, "b2": jnp.zeros((1, hidden_dim), jnp.float32),
        "w3": w3.T, "b3": jnp.zeros((1, half), jnp.float32),
        "wa": wa.T, "ba": jnp.zeros((1, action_dim), jnp.float32),
        "wc": wc.T, "bc": jnp.zeros((1, 1), jnp.float32),
    }


def pack_params(params, state_dim, action_dim, hidden_dim):
    """Pad widths to 128-lane multiples, fuse actor+critic heads into one weight,
    cast MXU operands (weights) to bf16.  Zero padding keeps semantics exact."""
    half = hidden_dim // 2
    hid_p = _round_up(hidden_dim, LANE)
    half_p = _round_up(half, LANE)
    head_p = _round_up(action_dim + 1, LANE)

    def pad2(a, rows, cols):
        return jnp.pad(a, ((0, rows - a.shape[0]), (0, cols - a.shape[1])))

    wh = jnp.concatenate([params["wa"], params["wc"]], axis=1)   # [half, A+1]
    bh = jnp.concatenate([params["ba"], params["bc"]], axis=1)   # [1, A+1]

    return {
        "w1": pad2(params["w1"], state_dim, hid_p).astype(jnp.bfloat16),
        "b1": pad2(params["b1"], 1, hid_p),
        "w2": pad2(params["w2"], hid_p, hid_p).astype(jnp.bfloat16),
        "b2": pad2(params["b2"], 1, hid_p),
        "w3": pad2(params["w3"], hid_p, half_p).astype(jnp.bfloat16),
        "b3": pad2(params["b3"], 1, half_p),
        "wh": pad2(wh, half_p, head_p).astype(jnp.bfloat16),
        "bh": pad2(bh, 1, head_p),
    }


# --------------------------------------------------------------------------- #
# Pure-JAX references
# --------------------------------------------------------------------------- #
def ppo_forward_ref_f32(state, params):
    """Exact f32 forward (matches the PyTorch module)."""
    h = jnp.maximum(state @ params["w1"] + params["b1"], 0.0)
    h = jnp.maximum(h @ params["w2"] + params["b2"], 0.0)
    h = jnp.maximum(h @ params["w3"] + params["b3"], 0.0)
    return h @ params["wa"] + params["ba"], h @ params["wc"] + params["bc"]


def ppo_forward_ref_bf16(state, packed, action_dim):
    """Reference mirroring the kernel's bf16-operand / f32-accumulate / bf16-out math."""
    def dot(a, w):
        return jnp.dot(a.astype(jnp.bfloat16), w,
                       preferred_element_type=jnp.float32)
    h = jnp.maximum(dot(state, packed["w1"]) + packed["b1"], 0.0)
    h = jnp.maximum(dot(h, packed["w2"]) + packed["b2"], 0.0)
    h = jnp.maximum(dot(h, packed["w3"]) + packed["b3"], 0.0)
    out = (dot(h, packed["wh"]) + packed["bh"]).astype(jnp.bfloat16)
    return out[:, :action_dim], out[:, action_dim:action_dim + 1]


# --------------------------------------------------------------------------- #
# Demo / self-check
# --------------------------------------------------------------------------- #
if __name__ == "__main__":
    key = jax.random.PRNGKey(0)
    k_param, k_state, k_state2 = jax.random.split(key, 3)

    # Small, forward-consistent shapes.
    batch, state_dim, action_dim, hidden_dim = 8, 16, 4, 32

    params = init_params(k_param, state_dim, action_dim, hidden_dim)
    packed = pack_params(params, state_dim, action_dim, hidden_dim)

    state = jax.random.normal(k_state, (batch, state_dim), dtype=jnp.float32)

    logits, value = ppo_forward(state, packed, action_dim)
    jax.block_until_ready((logits, value))

    assert logits.shape == (batch, action_dim)
    assert value.shape == (batch, 1)

    # Match the kernel's own precision recipe tightly...
    l_bf, v_bf = ppo_forward_ref_bf16(state, packed, action_dim)
    assert jnp.allclose(logits.astype(jnp.float32), l_bf.astype(jnp.float32),
                        atol=3e-2, rtol=3e-2)
    assert jnp.allclose(value.astype(jnp.float32), v_bf.astype(jnp.float32),
                        atol=3e-2, rtol=3e-2)
    # ...and the exact f32 PyTorch-equivalent forward loosely (bf16 rounding).
    l_f32, v_f32 = ppo_forward_ref_f32(state, params)
    assert jnp.allclose(logits.astype(jnp.float32), l_f32, atol=1e-1, rtol=1e-1)
    assert jnp.allclose(value.astype(jnp.float32), v_f32, atol=1e-1, rtol=1e-1)

    # Second check: batch not divisible by the tile -> exercises the multi-step
    # "parallel" grid, resident-weight specs, and partial-last-block handling
    # (no wrapper padding of the state anymore).
    big_batch = 600
    state2 = jax.random.normal(k_state2, (big_batch, state_dim), dtype=jnp.float32)
    logits2, value2 = ppo_forward(state2, packed, action_dim)
    jax.block_until_ready((logits2, value2))
    l2_bf, v2_bf = ppo_forward_ref_bf16(state2, packed, action_dim)
    assert logits2.shape == (big_batch, action_dim)
    assert value2.shape == (big_batch, 1)
    assert jnp.allclose(logits2.astype(jnp.float32), l2_bf.astype(jnp.float32),
                        atol=3e-2, rtol=3e-2)
    assert jnp.allclose(value2.astype(jnp.float32), v2_bf.astype(jnp.float32),
                        atol=3e-2, rtol=3e-2)

    # Fused-output path (consumer-side slicing; avoids extra HBM slice copies).
    fused = ppo_forward(state2, packed, action_dim, return_fused=True)
    jax.block_until_ready(fused)
    assert fused.shape == (big_batch, packed["wh"].shape[1])
    assert fused.dtype == jnp.bfloat16

    print("KERNEL_OK")
</pallas_src>

<mosaic_0001>
module attributes {stable_mosaic.version = 11 : i64} {
  func.func @ppo_fused_kernel(%arg0: i32, %arg1: memref<8x16xf32, #tpu.memory_space<vmem>>, %arg2: memref<16x128xbf16, #tpu.memory_space<vmem>>, %arg3: memref<1x128xf32, #tpu.memory_space<vmem>>, %arg4: memref<128x128xbf16, #tpu.memory_space<vmem>>, %arg5: memref<1x128xf32, #tpu.memory_space<vmem>>, %arg6: memref<128x128xbf16, #tpu.memory_space<vmem>>, %arg7: memref<1x128xf32, #tpu.memory_space<vmem>>, %arg8: memref<128x128xbf16, #tpu.memory_space<vmem>>, %arg9: memref<1x128xf32, #tpu.memory_space<vmem>>, %arg10: memref<8x128xbf16, #tpu.memory_space<vmem>>) attributes {dimension_semantics = [#tpu.dimension_semantics<parallel>], iteration_bounds = array<i64: 1>, scalar_prefetch = 0 : i64, scratch_operands = 0 : i64, tpu.core_type = #tpu.core_type<tc>, window_params = [{transform_indices = @transform_0, window_bounds = array<i64: 8, 16>}, {pipeline_mode = #tpu.pipeline_mode<synchronous>, transform_indices = @transform_1, window_bounds = array<i64: 16, 128>}, {pipeline_mode = #tpu.pipeline_mode<synchronous>, transform_indices = @transform_2, window_bounds = array<i64: 1, 128>}, {pipeline_mode = #tpu.pipeline_mode<synchronous>, transform_indices = @transform_3, window_bounds = array<i64: 128, 128>}, {pipeline_mode = #tpu.pipeline_mode<synchronous>, transform_indices = @transform_4, window_bounds = array<i64: 1, 128>}, {pipeline_mode = #tpu.pipeline_mode<synchronous>, transform_indices = @transform_5, window_bounds = array<i64: 128, 128>}, {pipeline_mode = #tpu.pipeline_mode<synchronous>, transform_indices = @transform_6, window_bounds = array<i64: 1, 128>}, {pipeline_mode = #tpu.pipeline_mode<synchronous>, transform_indices = @transform_7, window_bounds = array<i64: 128, 128>}, {pipeline_mode = #tpu.pipeline_mode<synchronous>, transform_indices = @transform_8, window_bounds = array<i64: 1, 128>}, {transform_indices = @transform_9, window_bounds = array<i64: 8, 128>}]} {
    %c0 = arith.constant 0 : index
    %c0_0 = arith.constant 0 : index
    %0 = vector.load %arg1[%c0, %c0_0] : memref<8x16xf32, #tpu.memory_space<vmem>>, vector<8x16xf32>
    %1 = arith.truncf %0 : vector<8x16xf32> to vector<8x16xbf16>
    %c0_1 = arith.constant 0 : index
    %c0_2 = arith.constant 0 : index
    %2 = vector.load %arg2[%c0_1, %c0_2] : memref<16x128xbf16, #tpu.memory_space<vmem>>, vector<16x128xbf16>
    %cst = arith.constant dense<0.000000e+00> : vector<8x128xf32>
    %3 = tpu.matmul %1, %2, %cst {dimension_numbers = #tpu.dot_dimension_numbers<[1], [0], [0], [1], [0, 0, 1, 1], [], []>} : vector<8x16xbf16>, vector<16x128xbf16>, vector<8x128xf32> -> vector<8x128xf32>
    %c0_3 = arith.constant 0 : index
    %c0_4 = arith.constant 0 : index
    %4 = vector.load %arg3[%c0_3, %c0_4] : memref<1x128xf32, #tpu.memory_space<vmem>>, vector<1x128xf32>
    %5 = vector.broadcast %4 : vector<1x128xf32> to vector<8x128xf32>
    %6 = arith.addf %3, %5 : vector<8x128xf32>
    %cst_5 = arith.constant 0.000000e+00 : f32
    %7 = vector.broadcast %cst_5 : f32 to vector<8x128xf32>
    %8 = arith.maximumf %6, %7 : vector<8x128xf32>
    %9 = arith.truncf %8 : vector<8x128xf32> to vector<8x128xbf16>
    %c0_6 = arith.constant 0 : index
    %c0_7 = arith.constant 0 : index
    %10 = vector.load %arg4[%c0_6, %c0_7] : memref<128x128xbf16, #tpu.memory_space<vmem>>, vector<128x128xbf16>
    %cst_8 = arith.constant dense<0.000000e+00> : vector<8x128xf32>
    %11 = tpu.matmul %9, %10, %cst_8 {dimension_numbers = #tpu.dot_dimension_numbers<[1], [0], [0], [1], [0, 0, 1, 1], [], []>} : vector<8x128xbf16>, vector<128x128xbf16>, vector<8x128xf32> -> vector<8x128xf32>
    %c0_9 = arith.constant 0 : index
    %c0_10 = arith.constant 0 : index
    %12 = vector.load %arg5[%c0_9, %c0_10] : memref<1x128xf32, #tpu.memory_space<vmem>>, vector<1x128xf32>
    %13 = vector.broadcast %12 : vector<1x128xf32> to vector<8x128xf32>
    %14 = arith.addf %11, %13 : vector<8x128xf32>
    %cst_11 = arith.constant 0.000000e+00 : f32
    %15 = vector.broadcast %cst_11 : f32 to vector<8x128xf32>
    %16 = arith.maximumf %14, %15 : vector<8x128xf32>
    %17 = arith.truncf %16 : vector<8x128xf32> to vector<8x128xbf16>
    %c0_12 = arith.constant 0 : index
    %c0_13 = arith.constant 0 : index
    %18 = vector.load %arg6[%c0_12, %c0_13] : memref<128x128xbf16, #tpu.memory_space<vmem>>, vector<128x128xbf16>
    %cst_14 = arith.constant dense<0.000000e+00> : vector<8x128xf32>
    %19 = tpu.matmul %17, %18, %cst_14 {dimension_numbers = #tpu.dot_dimension_numbers<[1], [0], [0], [1], [0, 0, 1, 1], [], []>} : vector<8x128xbf16>, vector<128x128xbf16>, vector<8x128xf32> -> vector<8x128xf32>
    %c0_15 = arith.constant 0 : index
    %c0_16 = arith.constant 0 : index
    %20 = vector.load %arg7[%c0_15, %c0_16] : memref<1x128xf32, #tpu.memory_space<vmem>>, vector<1x128xf32>
    %21 = vector.broadcast %20 : vector<1x128xf32> to vector<8x128xf32>
    %22 = arith.addf %19, %21 : vector<8x128xf32>
    %cst_17 = arith.constant 0.000000e+00 : f32
    %23 = vector.broadcast %cst_17 : f32 to vector<8x128xf32>
    %24 = arith.maximumf %22, %23 : vector<8x128xf32>
    %25 = arith.truncf %24 : vector<8x128xf32> to vector<8x128xbf16>
    %c0_18 = arith.constant 0 : index
    %c0_19 = arith.constant 0 : index
    %26 = vector.load %arg8[%c0_18, %c0_19] : memref<128x128xbf16, #tpu.memory_space<vmem>>, vector<128x128xbf16>
    %cst_20 = arith.constant dense<0.000000e+00> : vector<8x128xf32>
    %27 = tpu.matmul %25, %26, %cst_20 {dimension_numbers = #tpu.dot_dimension_numbers<[1], [0], [0], [1], [0, 0, 1, 1], [], []>} : vector<8x128xbf16>, vector<128x128xbf16>, vector<8x128xf32> -> vector<8x128xf32>
    %c0_21 = arith.constant 0 : index
    %c0_22 = arith.constant 0 : index
    %28 = vector.load %arg9[%c0_21, %c0_22] : memref<1x128xf32, #tpu.memory_space<vmem>>, vector<1x128xf32>
    %29 = vector.broadcast %28 : vector<1x128xf32> to vector<8x128xf32>
    %30 = arith.addf %27, %29 : vector<8x128xf32>
    %31 = arith.truncf %30 : vector<8x128xf32> to vector<8x128xbf16>
    %c0_23 = arith.constant 0 : index
    %c0_24 = arith.constant 0 : index
    %32 = vector.load %arg10[%c0_23, %c0_24] : memref<8x128xbf16, #tpu.memory_space<vmem>>, vector<8x128xbf16>
    tpu.vector_store %arg10[%c0_23, %c0_24], %31 {strides = array<i32>} : memref<8x128xbf16, #tpu.memory_space<vmem>>, vector<8x128xbf16>,
    return
  }
  func.func @transform_0(%arg0: i32) -> (i32, i32) {
    %c0_i32 = arith.constant 0 : i32
    %c0_i32_0 = arith.constant 0 : i32
    return %arg0, %c0_i32 : i32, i32
  }
  func.func @transform_1(%arg0: i32) -> (i32, i32) {
    %c0_i32 = arith.constant 0 : i32
    %c0_i32_0 = arith.constant 0 : i32
    %c0_i32_1 = arith.constant 0 : i32
    return %c0_i32, %c0_i32_0 : i32, i32
  }
  func.func @transform_2(%arg0: i32) -> (i32, i32) {
    %c0_i32 = arith.constant 0 : i32
    %c0_i32_0 = arith.constant 0 : i32
    %c0_i32_1 = arith.constant 0 : i32
    return %c0_i32, %c0_i32_0 : i32, i32
  }
  func.func @transform_3(%arg0: i32) -> (i32, i32) {
    %c0_i32 = arith.constant 0 : i32
    %c0_i32_0 = arith.constant 0 : i32
    %c0_i32_1 = arith.constant 0 : i32
    return %c0_i32, %c0_i32_0 : i32, i32
  }
  func.func @transform_4(%arg0: i32) -> (i32, i32) {
    %c0_i32 = arith.constant 0 : i32
    %c0_i32_0 = arith.constant 0 : i32
    %c0_i32_1 = arith.constant 0 : i32
    return %c0_i32, %c0_i32_0 : i32, i32
  }
  func.func @transform_5(%arg0: i32) -> (i32, i32) {
    %c0_i32 = arith.constant 0 : i32
    %c0_i32_0 = arith.constant 0 : i32
    %c0_i32_1 = arith.constant 0 : i32
    return %c0_i32, %c0_i32_0 : i32, i32
  }
  func.func @transform_6(%arg0: i32) -> (i32, i32) {
    %c0_i32 = arith.constant 0 : i32
    %c0_i32_0 = arith.constant 0 : i32
    %c0_i32_1 = arith.constant 0 : i32
    return %c0_i32, %c0_i32_0 : i32, i32
  }
  func.func @transform_7(%arg0: i32) -> (i32, i32) {
    %c0_i32 = arith.constant 0 : i32
    %c0_i32_0 = arith.constant 0 : i32
    %c0_i32_1 = arith.constant 0 : i32
    return %c0_i32, %c0_i32_0 : i32, i32
  }
  func.func @transform_8(%arg0: i32) -> (i32, i32) {
    %c0_i32 = arith.constant 0 : i32
    %c0_i32_0 = arith.constant 0 : i32
    %c0_i32_1 = arith.constant 0 : i32
    return %c0_i32, %c0_i32_0 : i32, i32
  }
  func.func @transform_9(%arg0: i32) -> (i32, i32) {
    %c0_i32 = arith.constant 0 : i32
    %c0_i32_0 = arith.constant 0 : i32
    return %arg0, %c0_i32 : i32, i32
  }
}

</mosaic_0001>

<llo_original>
// kernel: tpu_custom_call.1
$region0: #{tpu_custom_call.1}
  #allocation0 [shape = 'u32[]', space=smem, size = 0x4, offset = 0x4, fixed_abs, tag = 'smem constant byte address 0x4 - core index']
  #allocation1 [shape = 'u32[144,128]{1,0:T(1,128)}', space=vmem, size = 0x12000, scoped, tag = 'internal scratch']
  %s0 = inlined_call_operand.hbm [shape: f32[8,16], index: 0, kind: input, shape index: {}]
  %s1 = inlined_call_operand.hbm [shape: bf16[16,128], index: 1, kind: input, shape index: {}]
  %s2 = inlined_call_operand.vmem [shape: f32[1,128], index: 2, kind: input, shape index: {}]
  %s3 = inlined_call_operand.hbm [shape: bf16[128,128], index: 3, kind: input, shape index: {}]
  %s4 = inlined_call_operand.vmem [shape: f32[1,128], index: 4, kind: input, shape index: {}]
  %s5 = inlined_call_operand.hbm [shape: bf16[128,128], index: 5, kind: input, shape index: {}]
  %s6 = inlined_call_operand.vmem [shape: f32[1,128], index: 6, kind: input, shape index: {}]
  %s7 = inlined_call_operand.hbm [shape: bf16[128,128], index: 7, kind: input, shape index: {}]
  %s8 = inlined_call_operand.vmem [shape: f32[1,128], index: 8, kind: input, shape index: {}]
  %s9 = inlined_call_operand.hbm [shape: bf16[8,128], index: 9, kind: output, shape index: {}]
  %s10 = sld [smem:[#allocation0]]
  $region66: #{tpu_custom_call.1} parent=0
    _
  %s12 = ssub.s32 1, %s10
  %s13 = scalar_select 0, %s12, %s10
  $region1: #{tpu_custom_call.1} parent=0
    #allocation2 [shape = 'u8[4096]{0}', space=vmem, size = 0x1000, scoped, tag = 'input window, operand 0, single buffered']
    #allocation3 [shape = 's32[1]{0}', space=sflag, size = 0x4, scoped, tag = 'scoped memory for tpu_custom_call.1']
    #allocation4 [shape = 's32[1]{0}', space=sflag, size = 0x4, scoped, tag = 'scoped memory for tpu_custom_call.1']
    #allocation5 [shape = 'u8[4096]{0}', space=vmem, size = 0x1000, scoped, tag = 'input window, operand 1, single buffered']
    #allocation6 [shape = 's32[1]{0}', space=sflag, size = 0x4, scoped, tag = 'scoped memory for tpu_custom_call.1']
    #allocation7 [shape = 'u8[32768]{0}', space=vmem, size = 0x8000, scoped, tag = 'input window, operand 3, single buffered']
    #allocation8 [shape = 'u8[32768]{0}', space=vmem, size = 0x8000, scoped, tag = 'input window, operand 5, single buffered']
    #allocation9 [shape = 's32[1]{0}', space=sflag, size = 0x4, scoped, tag = 'scoped memory for tpu_custom_call.1']
    #allocation10 [shape = 'u8[32768]{0}', space=vmem, size = 0x8000, scoped, tag = 'input window, operand 7, single buffered']
    #allocation11 [shape = 'u8[2048]{0}', space=vmem, size = 0x800, scoped, tag = 'output window, operand 0, single buffered']
    %14 = vsyncpa [#allocation3], 0
    %15 = vsyncpa [#allocation6], 0
    %16 = vsyncpa [#allocation9], 0
    %17 = vsyncpa [#allocation4], 0
    // Predicated region
    $region2: #{tpu_custom_call.1} parent=1 // pred_check
      _
    $region3: #{tpu_custom_call.1} parent=1 // pred_check_branch
      %19 = sbr.rel (0) target = $region5
    $region4: #{tpu_custom_call.1} parent=1 // pred_region
      %s21 = ssub.s32 128, 128
      %22 = vsyncadd [#allocation3], %s21
      %s24 = sshll.u32 [#allocation2], 4
      %s25 = int_to_ptr.vmem [resolvable:$true] %s24
      %27 = dma.hbm_to_vmem [thread:$0]  %s0, 128, %s25, [#allocation3]
    $region5: #{tpu_custom_call.1} parent=1 // pred_fallthru
      _
    // Predicated region
    $region6: #{tpu_custom_call.1} parent=1 // pred_check
      _
    $region7: #{tpu_custom_call.1} parent=1 // pred_check_branch
      %29 = sbr.rel (0) target = $region9
    $region8: #{tpu_custom_call.1} parent=1 // pred_region
      %s31 = ssub.s32 128, 128
      %32 = vsyncadd [#allocation6], %s31
      %s33 = sshll.u32 [#allocation5], 4
      %s34 = int_to_ptr.vmem [resolvable:$true] %s33
      %39 = dma.hbm_to_vmem [thread:$0]  %s1, 128, %s34, [#allocation6], 64, 64, 4
    $region9: #{tpu_custom_call.1} parent=1 // pred_fallthru
      _
    // Predicated region
    $region10: #{tpu_custom_call.1} parent=1 // pred_check
      _
    $region11: #{tpu_custom_call.1} parent=1 // pred_check_branch
      %41 = sbr.rel (0) target = $region13
    $region12: #{tpu_custom_call.1} parent=1 // pred_region
      _
    $region13: #{tpu_custom_call.1} parent=1 // pred_fallthru
      _
    // Predicated region
    $region14: #{tpu_custom_call.1} parent=1 // pred_check
      _
    $region15: #{tpu_custom_call.1} parent=1 // pred_check_branch
      %43 = sbr.rel (0) target = $region17
    $region16: #{tpu_custom_call.1} parent=1 // pred_region
      %s45 = ssub.s32 1024, 1024
      %46 = vsyncadd [#allocation6], %s45
      %s47 = sshll.u32 [#allocation7], 4
      %s48 = int_to_ptr.vmem [resolvable:$true] %s47
      %53 = dma.hbm_to_vmem [thread:$0]  %s3, 1024, %s48, [#allocation6], 64, 64, 4
    $region17: #{tpu_custom_call.1} parent=1 // pred_fallthru
      _
    // Predicated region
    $region18: #{tpu_custom_call.1} parent=1 // pred_check
      _
    $region19: #{tpu_custom_call.1} parent=1 // pred_check_branch
      %55 = sbr.rel (0) target = $region21
    $region20: #{tpu_custom_call.1} parent=1 // pred_region
      _
    $region21: #{tpu_custom_call.1} parent=1 // pred_fallthru
      _
    // Predicated region
    $region22: #{tpu_custom_call.1} parent=1 // pred_check
      _
    $region23: #{tpu_custom_call.1} parent=1 // pred_check_branch
      %57 = sbr.rel (0) target = $region25
    $region24: #{tpu_custom_call.1} parent=1 // pred_region
      %s59 = ssub.s32 1024, 1024
      %60 = vsyncadd [#allocation9], %s59
      %s61 = sshll.u32 [#allocation8], 4
      %s62 = int_to_ptr.vmem [resolvable:$true] %s61
      %67 = dma.hbm_to_vmem [thread:$0]  %s5, 1024, %s62, [#allocation9], 64, 64, 4
    $region25: #{tpu_custom_call.1} parent=1 // pred_fallthru
      _
    // Predicated region
    $region26: #{tpu_custom_call.1} parent=1 // pred_check
      _
    $region27: #{tpu_custom_call.1} parent=1 // pred_check_branch
      %69 = sbr.rel (0) target = $region29
    $region28: #{tpu_custom_call.1} parent=1 // pred_region
      _
    $region29: #{tpu_custom_call.1} parent=1 // pred_fallthru
      _
    // Predicated region
    $region30: #{tpu_custom_call.1} parent=1 // pred_check
      _
    $region31: #{tpu_custom_call.1} parent=1 // pred_check_branch
      %71 = sbr.rel (0) target = $region33
    $region32: #{tpu_custom_call.1} parent=1 // pred_region
      %s73 = ssub.s32 1024, 1024
      %74 = vsyncadd [#allocation9], %s73
      %s75 = sshll.u32 [#allocation10], 4
      %s76 = int_to_ptr.vmem [resolvable:$true] %s75
      %81 = dma.hbm_to_vmem [thread:$0]  %s7, 1024, %s76, [#allocation9], 64, 64, 4
    $region33: #{tpu_custom_call.1} parent=1 // pred_fallthru
      _
    // Predicated region
    $region34: #{tpu_custom_call.1} parent=1 // pred_check
      _
    $region35: #{tpu_custom_call.1} parent=1 // pred_check_branch
      %83 = sbr.rel (0) target = $region37
    $region36: #{tpu_custom_call.1} parent=1 // pred_region
      _
    $region37: #{tpu_custom_call.1} parent=1 // pred_fallthru
      _
    // Predicated region
    $region38: #{tpu_custom_call.1} parent=1 // pred_check
      _
    $region39: #{tpu_custom_call.1} parent=1 // pred_check_branch
      %85 = sbr.rel (0) target = $region41
    $region40: #{tpu_custom_call.1} parent=1 // pred_region
      %86 = dma.done [#allocation3], 128
    $region41: #{tpu_custom_call.1} parent=1 // pred_fallthru
      _
    // Predicated region
    $region42: #{tpu_custom_call.1} parent=1 // pred_check
      _
    $region43: #{tpu_custom_call.1} parent=1 // pred_check_branch
      %88 = sbr.rel (0) target = $region45
    $region44: #{tpu_custom_call.1} parent=1 // pred_region
      %89 = dma.done [#allocation6], 128
    $region45: #{tpu_custom_call.1} parent=1 // pred_fallthru
      _
    // Predicated region
    $region46: #{tpu_custom_call.1} parent=1 // pred_check
      _
    $region47: #{tpu_custom_call.1} parent=1 // pred_check_branch
      %91 = sbr.rel (0) target = $region49
    $region48: #{tpu_custom_call.1} parent=1 // pred_region
      %92 = dma.done [#allocation6], 1024
    $region49: #{tpu_custom_call.1} parent=1 // pred_fallthru
      _
    // Predicated region
    $region50: #{tpu_custom_call.1} parent=1 // pred_check
      _
    $region51: #{tpu_custom_call.1} parent=1 // pred_check_branch
      %94 = sbr.rel (0) target = $region53
    $region52: #{tpu_custom_call.1} parent=1 // pred_region
      %95 = dma.done [#allocation9], 1024
    $region53: #{tpu_custom_call.1} parent=1 // pred_fallthru
      _
    // Predicated region
    $region54: #{tpu_custom_call.1} parent=1 // pred_check
      _
    $region55: #{tpu_custom_call.1} parent=1 // pred_check_branch
      %97 = sbr.rel (0) target = $region57
    $region56: #{tpu_custom_call.1} parent=1 // pred_region
      %98 = dma.done [#allocation9], 1024
    $region57: #{tpu_custom_call.1} parent=1 // pred_fallthru
      _
    %v100 = vld [vmem:[#allocation2] sm:$0xff]
    %v101 = vpack.c.bf16 %v100, %v100
    %v102 = vld [vmem:[#allocation5] sm:$0xf]
    %v103 = vld [vmem:[#allocation5 + $0x4] sm:$0xf]
    %v104 = vld [vmem:[%s2] sm:$0x1]
    %v106 = vlaneseq
    %v107 = vshrl.u32 %v106, 7
    %v108 = vsub.s32 0, %v107
    %v109 = vrot.slane %v104, %v108
    %v113 = vunpack.c.l.b16 %v102
    %v114 = vunpack.c.l.b16 %v103
    %v115 = vpack.c.b16 %v114, %v113
    %vm117 = vcmask 130048
    %v119 = vsel %vm117, %v101, 0
    %121 = vmatprep.subr.bf16.mxu0 0
    %122 = vmatpush1.bf16.msra.mxu0 %v115
    %123 = vmatprep.subr.bf16.mxu0 0
    %124 = vmatpush1.bf16.msra.mxu0 0
    %125 = vmatprep.subr.bf16.mxu0 0
    %126 = vmatpush1.bf16.msra.mxu0 0
    %127 = vmatprep.subr.bf16.mxu0 0
    %128 = vmatpush1.bf16.msra.mxu0 0
    %129 = vmatprep.subr.bf16.mxu0 0
    %130 = vmatpush1.bf16.msra.mxu0 0
    %131 = vmatprep.subr.bf16.mxu0 0
    %132 = vmatpush1.bf16.msra.mxu0 0
    %133 = vmatprep.subr.bf16.mxu0 0
    %134 = vmatpush1.bf16.msra.mxu0 0
    %135 = vmatprep.subr.bf16.mxu0 0
    %136 = vmatpush1.bf16.msra.mxu0 0
    %137 = vmatprep.subr.bf16.mxu0 0
    %138 = vmatpush1.bf16.msra.mxu0 0
    %139 = vmatprep.subr.bf16.mxu0 0
    %140 = vmatpush1.bf16.msra.mxu0 0
    %141 = vmatprep.subr.bf16.mxu0 0
    %142 = vmatpush1.bf16.msra.mxu0 0
    %143 = vmatprep.subr.bf16.mxu0 0
    %144 = vmatpush1.bf16.msra.mxu0 0
    %145 = vmatprep.subr.bf16.mxu0 0
    %146 = vmatpush1.bf16.msra.mxu0 0
    %147 = vmatprep.subr.bf16.mxu0 0
    %148 = vmatpush1.bf16.msra.mxu0 0
    %149 = vmatprep.subr.bf16.mxu0 0
    %150 = vmatpush1.bf16.msra.mxu0 0
    %151 = vmatprep.subr.bf16.mxu0 0
    %152 = vmatpush1.bf16.msra.mxu0 0
    %153 = vmatprep.mubr.bf16.mxu0 0
    %154 = vmatmul.mubr.bf16.gmra.mrb[0].mxu0 %v119
    %v155 = vpop.f32.mrb[0].mxu0
    %v156 = vadd.f32 %v109, %v155
    %v157 = vpop.f32.mrb[0].mxu0
    %v158 = vpop.f32.mrb[0].mxu0
    %v159 = vpop.f32.mrb[0].mxu0
    %160 = vdwg.mxu0
    %v161 = vmax.f32 %v156, 0.0
    %v162 = vpack.c.bf16 %v161, %v161
    %v163 = vld [vmem:[#allocation7] sm:$0xf]
    %v164 = vld [vmem:[#allocation7 + $0x4] sm:$0xf]
    %v165 = vld [vmem:[#allocation7 + $0x8] sm:$0xf]
    %v166 = vld [vmem:[#allocation7 + $0xc] sm:$0xf]
    %v167 = vld [vmem:[#allocation7 + $0x10] sm:$0xf]
    %v168 = vld [vmem:[#allocation7 + $0x14] sm:$0xf]
    %v169 = vld [vmem:[#allocation7 + $0x18] sm:$0xf]
    %v170 = vld [vmem:[#allocation7 + $0x1c] sm:$0xf]
    %v171 = vld [vmem:[#allocation7 + $0x20] sm:$0xf]
    %v172 = vld [vmem:[#allocation7 + $0x24] sm:$0xf]
    %v173 = vld [vmem:[#allocation7 + $0x28] sm:$0xf]
    %v174 = vld [vmem:[#allocation7 + $0x2c] sm:$0xf]
    %v175 = vld [vmem:[#allocation7 + $0x30] sm:$0xf]
    %v176 = vld [vmem:[#allocation7 + $0x34] sm:$0xf]
    %v177 = vld [vmem:[#allocation7 + $0x38] sm:$0xf]
    %v178 = vld [vmem:[#allocation7 + $0x3c] sm:$0xf]
    %v179 = vld [vmem:[%s4] sm:$0x1]
    %v181 = vlaneseq
    %v182 = vshrl.u32 %v181, 7
    %v183 = vsub.s32 0, %v182
    %v184 = vrot.slane %v179, %v183
    %v202 = vunpack.c.l.b16 %v163
    %v203 = vunpack.c.l.b16 %v164
    %v204 = vunpack.c.l.b16 %v165
    %v205 = vunpack.c.l.b16 %v166
    %v206 = vunpack.c.l.b16 %v167
    %v207 = vunpack.c.l.b16 %v168
    %v208 = vunpack.c.l.b16 %v169
    %v209 = vunpack.c.l.b16 %v170
    %v210 = vunpack.c.l.b16 %v171
    %v211 = vunpack.c.l.b16 %v172
    %v212 = vunpack.c.l.b16 %v173
    %v213 = vunpack.c.l.b16 %v174
    %v214 = vunpack.c.l.b16 %v175
    %v215 = vunpack.c.l.b16 %v176
    %v216 = vunpack.c.l.b16 %v177
    %v217 = vunpack.c.l.b16 %v178
    %v218 = vpack.c.b16 %v203, %v202
    %v219 = vpack.c.b16 %v205, %v204
    %v220 = vpack.c.b16 %v207, %v206
    %v221 = vpack.c.b16 %v209, %v208
    %v222 = vpack.c.b16 %v211, %v210
    %v223 = vpack.c.b16 %v213, %v212
    %v224 = vpack.c.b16 %v215, %v214
    %v225 = vpack.c.b16 %v217, %v216
    %234 = vmatprep.subr.bf16.mxu0 0
    %235 = vmatpush1.bf16.msra.mxu0 %v218
    %236 = vmatprep.subr.bf16.mxu0 0
    %237 = vmatpush1.bf16.msra.mxu0 %v219
    %238 = vmatprep.subr.bf16.mxu0 0
    %239 = vmatpush1.bf16.msra.mxu0 %v220
    %240 = vmatprep.subr.bf16.mxu0 0
    %241 = vmatpush1.bf16.msra.mxu0 %v221
    %242 = vmatprep.subr.bf16.mxu0 0
    %243 = vmatpush1.bf16.msra.mxu0 %v222
    %244 = vmatprep.subr.bf16.mxu0 0
    %245 = vmatpush1.bf16.msra.mxu0 %v223
    %246 = vmatprep.subr.bf16.mxu0 0
    %247 = vmatpush1.bf16.msra.mxu0 %v224
    %248 = vmatprep.subr.bf16.mxu0 0
    %249 = vmatpush1.bf16.msra.mxu0 %v225
    %250 = vmatprep.subr.bf16.mxu0 0
    %251 = vmatpush1.bf16.msra.mxu0 0
    %252 = vmatprep.subr.bf16.mxu0 0
    %253 = vmatpush1.bf16.msra.mxu0 0
    %254 = vmatprep.subr.bf16.mxu0 0
    %255 = vmatpush1.bf16.msra.mxu0 0
    %256 = vmatprep.subr.bf16.mxu0 0
    %257 = vmatpush1.bf16.msra.mxu0 0
    %258 = vmatprep.subr.bf16.mxu0 0
    %259 = vmatpush1.bf16.msra.mxu0 0
    %260 = vmatprep.subr.bf16.mxu0 0
    %261 = vmatpush1.bf16.msra.mxu0 0
    %262 = vmatprep.subr.bf16.mxu0 0
    %263 = vmatpush1.bf16.msra.mxu0 0
    %264 = vmatprep.subr.bf16.mxu0 0
    %265 = vmatpush1.bf16.msra.mxu0 0
    %266 = vmatprep.mubr.bf16.mxu0 0
    %267 = vmatmul.mubr.bf16.gmra.mrb[0].mxu0 %v162
    %v268 = vpop.f32.mrb[0].mxu0
    %v269 = vadd.f32 %v184, %v268
    %v270 = vpop.f32.mrb[0].mxu0
    %v271 = vpop.f32.mrb[0].mxu0
    %v272 = vpop.f32.mrb[0].mxu0
    %273 = vdwg.mxu0
    %v274 = vmax.f32 %v269, 0.0
    %v275 = vpack.c.bf16 %v274, %v274
    %v276 = vld [vmem:[#allocation8] sm:$0xf]
    %v277 = vld [vmem:[#allocation8 + $0x4] sm:$0xf]
    %v278 = vld [vmem:[#allocation8 + $0x8] sm:$0xf]
    %v279 = vld [vmem:[#allocation8 + $0xc] sm:$0xf]
    %v280 = vld [vmem:[#allocation8 + $0x10] sm:$0xf]
    %v281 = vld [vmem:[#allocation8 + $0x14] sm:$0xf]
    %v282 = vld [vmem:[#allocation8 + $0x18] sm:$0xf]
    %v283 = vld [vmem:[#allocation8 + $0x1c] sm:$0xf]
    %v284 = vld [vmem:[#allocation8 + $0x20] sm:$0xf]
    %v285 = vld [vmem:[#allocation8 + $0x24] sm:$0xf]
    %v286 = vld [vmem:[#allocation8 + $0x28] sm:$0xf]
    %v287 = vld [vmem:[#allocation8 + $0x2c] sm:$0xf]
    %v288 = vld [vmem:[#allocation8 + $0x30] sm:$0xf]
    %v289 = vld [vmem:[#allocation8 + $0x34] sm:$0xf]
    %v290 = vld [vmem:[#allocation8 + $0x38] sm:$0xf]
    %v291 = vld [vmem:[#allocation8 + $0x3c] sm:$0xf]
    %v292 = vld [vmem:[%s6] sm:$0x1]
    %v294 = vlaneseq
    %v295 = vshrl.u32 %v294, 7
    %v296 = vsub.s32 0, %v295
    %v297 = vrot.slane %v292, %v296
    %v315 = vunpack.c.l.b16 %v276
    %v316 = vunpack.c.l.b16 %v277
    %v317 = vunpack.c.l.b16 %v278
    %v318 = vunpack.c.l.b16 %v279
    %v319 = vunpack.c.l.b16 %v280
    %v320 = vunpack.c.l.b16 %v281
    %v321 = vunpack.c.l.b16 %v282
    %v322 = vunpack.c.l.b16 %v283
    %v323 = vunpack.c.l.b16 %v284
    %v324 = vunpack.c.l.b16 %v285
    %v325 = vunpack.c.l.b16 %v286
    %v326 = vunpack.c.l.b16 %v287
    %v327 = vunpack.c.l.b16 %v288
    %v328 = vunpack.c.l.b16 %v289
    %v329 = vunpack.c.l.b16 %v290
    %v330 = vunpack.c.l.b16 %v291
    %v331 = vpack.c.b16 %v316, %v315
    %v332 = vpack.c.b16 %v318, %v317
    %v333 = vpack.c.b16 %v320, %v319
    %v334 = vpack.c.b16 %v322, %v321
    %v335 = vpack.c.b16 %v324, %v323
    %v336 = vpack.c.b16 %v326, %v325
    %v337 = vpack.c.b16 %v328, %v327
    %v338 = vpack.c.b16 %v330, %v329
    %347 = vmatprep.subr.bf16.mxu0 0
    %348 = vmatpush1.bf16.msra.mxu0 %v331
    %349 = vmatprep.subr.bf16.mxu0 0
    %350 = vmatpush1.bf16.msra.mxu0 %v332
    %351 = vmatprep.subr.bf16.mxu0 0
    %352 = vmatpush1.bf16.msra.mxu0 %v333
    %353 = vmatprep.subr.bf16.mxu0 0
    %354 = vmatpush1.bf16.msra.mxu0 %v334
    %355 = vmatprep.subr.bf16.mxu0 0
    %356 = vmatpush1.bf16.msra.mxu0 %v335
    %357 = vmatprep.subr.bf16.mxu0 0
    %358 = vmatpush1.bf16.msra.mxu0 %v336
    %359 = vmatprep.subr.bf16.mxu0 0
    %360 = vmatpush1.bf16.msra.mxu0 %v337
    %361 = vmatprep.subr.bf16.mxu0 0
    %362 = vmatpush1.bf16.msra.mxu0 %v338
    %363 = vmatprep.subr.bf16.mxu0 0
    %364 = vmatpush1.bf16.msra.mxu0 0
    %365 = vmatprep.subr.bf16.mxu0 0
    %366 = vmatpush1.bf16.msra.mxu0 0
    %367 = vmatprep.subr.bf16.mxu0 0
    %368 = vmatpush1.bf16.msra.mxu0 0
    %369 = vmatprep.subr.bf16.mxu0 0
    %370 = vmatpush1.bf16.msra.mxu0 0
    %371 = vmatprep.subr.bf16.mxu0 0
    %372 = vmatpush1.bf16.msra.mxu0 0
    %373 = vmatprep.subr.bf16.mxu0 0
    %374 = vmatpush1.bf16.msra.mxu0 0
    %375 = vmatprep.subr.bf16.mxu0 0
    %376 = vmatpush1.bf16.msra.mxu0 0
    %377 = vmatprep.subr.bf16.mxu0 0
    %378 = vmatpush1.bf16.msra.mxu0 0
    %379 = vmatprep.mubr.bf16.mxu0 0
    %380 = vmatmul.mubr.bf16.gmra.mrb[0].mxu0 %v275
    %v381 = vpop.f32.mrb[0].mxu0
    %v382 = vadd.f32 %v297, %v381
    %v383 = vpop.f32.mrb[0].mxu0
    %v384 = vpop.f32.mrb[0].mxu0
    %v385 = vpop.f32.mrb[0].mxu0
    %386 = vdwg.mxu0
    %v387 = vmax.f32 %v382, 0.0
    %v388 = vpack.c.bf16 %v387, %v387
    %v389 = vld [vmem:[#allocation10] sm:$0xf]
    %v390 = vld [vmem:[#allocation10 + $0x4] sm:$0xf]
    %v391 = vld [vmem:[#allocation10 + $0x8] sm:$0xf]
    %v392 = vld [vmem:[#allocation10 + $0xc] sm:$0xf]
    %v393 = vld [vmem:[#allocation10 + $0x10] sm:$0xf]
    %v394 = vld [vmem:[#allocation10 + $0x14] sm:$0xf]
    %v395 = vld [vmem:[#allocation10 + $0x18] sm:$0xf]
    %v396 = vld [vmem:[#allocation10 + $0x1c] sm:$0xf]
    %v397 = vld [vmem:[#allocation10 + $0x20] sm:$0xf]
    %v398 = vld [vmem:[#allocation10 + $0x24] sm:$0xf]
    %v399 = vld [vmem:[#allocation10 + $0x28] sm:$0xf]
    %v400 = vld [vmem:[#allocation10 + $0x2c] sm:$0xf]
    %v401 = vld [vmem:[#allocation10 + $0x30] sm:$0xf]
    %v402 = vld [vmem:[#allocation10 + $0x34] sm:$0xf]
    %v403 = vld [vmem:[#allocation10 + $0x38] sm:$0xf]
    %v404 = vld [vmem:[#allocation10 + $0x3c] sm:$0xf]
    %v405 = vld [vmem:[%s8] sm:$0x1]
    %v407 = vlaneseq
    %v408 = vshrl.u32 %v407, 7
    %v409 = vsub.s32 0, %v408
    %v410 = vrot.slane %v405, %v409
    %v428 = vunpack.c.l.b16 %v389
    %v429 = vunpack.c.l.b16 %v390
    %v430 = vunpack.c.l.b16 %v391
    %v431 = vunpack.c.l.b16 %v392
    %v432 = vunpack.c.l.b16 %v393
    %v433 = vunpack.c.l.b16 %v394
    %v434 = vunpack.c.l.b16 %v395
    %v435 = vunpack.c.l.b16 %v396
    %v436 = vunpack.c.l.b16 %v397
    %v437 = vunpack.c.l.b16 %v398
    %v438 = vunpack.c.l.b16 %v399
    %v439 = vunpack.c.l.b16 %v400
    %v440 = vunpack.c.l.b16 %v401
    %v441 = vunpack.c.l.b16 %v402
    %v442 = vunpack.c.l.b16 %v403
    %v443 = vunpack.c.l.b16 %v404
    %v444 = vpack.c.b16 %v429, %v428
    %v445 = vpack.c.b16 %v431, %v430
    %v446 = vpack.c.b16 %v433, %v432
    %v447 = vpack.c.b16 %v435, %v434
    %v448 = vpack.c.b16 %v437, %v436
    %v449 = vpack.c.b16 %v439, %v438
    %v450 = vpack.c.b16 %v441, %v440
    %v451 = vpack.c.b16 %v443, %v442
    %460 = vmatprep.subr.bf16.mxu0 0
    %461 = vmatpush1.bf16.msra.mxu0 %v444
    %462 = vmatprep.subr.bf16.mxu0 0
    %463 = vmatpush1.bf16.msra.mxu0 %v445
    %464 = vmatprep.subr.bf16.mxu0 0
    %465 = vmatpush1.bf16.msra.mxu0 %v446
    %466 = vmatprep.subr.bf16.mxu0 0
    %467 = vmatpush1.bf16.msra.mxu0 %v447
    %468 = vmatprep.subr.bf16.mxu0 0
    %469 = vmatpush1.bf16.msra.mxu0 %v448
    %470 = vmatprep.subr.bf16.mxu0 0
    %471 = vmatpush1.bf16.msra.mxu0 %v449
    %472 = vmatprep.subr.bf16.mxu0 0
    %473 = vmatpush1.bf16.msra.mxu0 %v450
    %474 = vmatprep.subr.bf16.mxu0 0
    %475 = vmatpush1.bf16.msra.mxu0 %v451
    %476 = vmatprep.subr.bf16.mxu0 0
    %477 = vmatpush1.bf16.msra.mxu0 0
    %478 = vmatprep.subr.bf16.mxu0 0
    %479 = vmatpush1.bf16.msra.mxu0 0
    %480 = vmatprep.subr.bf16.mxu0 0
    %481 = vmatpush1.bf16.msra.mxu0 0
    %482 = vmatprep.subr.bf16.mxu0 0
    %483 = vmatpush1.bf16.msra.mxu0 0
    %484 = vmatprep.subr.bf16.mxu0 0
    %485 = vmatpush1.bf16.msra.mxu0 0
    %486 = vmatprep.subr.bf16.mxu0 0
    %487 = vmatpush1.bf16.msra.mxu0 0
    %488 = vmatprep.subr.bf16.mxu0 0
    %489 = vmatpush1.bf16.msra.mxu0 0
    %490 = vmatprep.subr.bf16.mxu0 0
    %491 = vmatpush1.bf16.msra.mxu0 0
    %492 = vmatprep.mubr.bf16.mxu0 0
    %493 = vmatmul.mubr.bf16.gmra.mrb[0].mxu0 %v388
    %v494 = vpop.f32.mrb[0].mxu0
    %v495 = vadd.f32 %v410, %v494
    %v496 = vpop.f32.mrb[0].mxu0
    %v497 = vpop.f32.mrb[0].mxu0
    %v498 = vpop.f32.mrb[0].mxu0
    %499 = vdwg.mxu0
    %v500 = vpack.c.bf16 %v495, %v495
    %501 = vst [vmem:[#allocation11] sm:$0xf] %v500
    // Predicated region
    $region58: #{tpu_custom_call.1} parent=1 // pred_check
      _
    $region59: #{tpu_custom_call.1} parent=1 // pred_check_branch
      %503 = sbr.rel (0) target = $region61
    $region60: #{tpu_custom_call.1} parent=1 // pred_region
      %s505 = ssub.s32 64, 64
      %506 = vsyncadd [#allocation4], %s505
      %s508 = sshll.u32 [#allocation11], 4
      %s509 = int_to_ptr.vmem [resolvable:$true] %s508
      %511 = dma.vmem_to_hbm [thread:$0]  %s509, 64, %s9, [#allocation4]
    $region61: #{tpu_custom_call.1} parent=1 // pred_fallthru
      _
    // Predicated region
    $region62: #{tpu_custom_call.1} parent=1 // pred_check
      _
    $region63: #{tpu_custom_call.1} parent=1 // pred_check_branch
      %513 = sbr.rel (0) target = $region65
    $region64: #{tpu_custom_call.1} parent=1 // pred_region
      %514 = dma.done [#allocation4], 64
    $region65: #{tpu_custom_call.1} parent=1 // pred_fallthru
      _
    %515 = vsyncpa [#allocation3], 1
    %516 = vsyncpa [#allocation6], 1
    %517 = vsyncpa [#allocation9], 1
    %518 = vsyncpa [#allocation4], 1

</llo_original>
